<compile_context>
chip_gen: v7x
topology: tpu7x:2x2x1
jax: 0.10.0
libtpu: 0.0.40
codegen_flags: <defaults>
</compile_context>

<pallas_src>
import math

import jax
import jax.numpy as jnp
from jax.experimental import pallas as pl
from jax.experimental.pallas import tpu as pltpu


# ------------------------------ helpers ------------------------------------ #
def to_2tuple(x):
    if isinstance(x, tuple):
        if len(x) == 2:
            return x
        raise ValueError(f"Expected tuple of length 2, got {len(x)}")
    return (x, x)


def get_pad_shape(input_shape, kernel_size, stride, dilation):
    """Same math as AdaptivePadding.get_pad_shape."""
    input_h, input_w = input_shape
    kernel_h, kernel_w = kernel_size
    stride_h, stride_w = stride
    output_h = math.ceil(input_h / stride_h)
    output_w = math.ceil(input_w / stride_w)
    pad_h = max((output_h - 1) * stride_h + (kernel_h - 1) * dilation[0] + 1 - input_h, 0)
    pad_w = max((output_w - 1) * stride_w + (kernel_w - 1) * dilation[1] + 1 - input_w, 0)
    return pad_h, pad_w


def _pick_planes_per_block(n_planes, in_plane_bytes, out_plane_bytes,
                           vmem_budget=8 << 20):
    """Largest divisor of n_planes whose double-buffered in+out block fits the
    VMEM budget, while keeping >= 2 grid steps (v7x has 2 TensorCores)."""
    per_plane = 2 * (in_plane_bytes + out_plane_bytes)  # double-buffered in + out
    best = 1
    for d in range(1, n_planes + 1):
        if n_planes % d != 0:
            continue
        if d * per_plane > vmem_budget:
            continue
        if n_planes // d < 2 and n_planes >= 2:
            continue  # keep at least 2 grid steps so both v7x TCs get work
        best = d
    return best


# ----------------------------- Pallas kernel ------------------------------- #
def _make_pad_kernel(H, W, pad_top, pad_left):
    def kernel(x_ref, o_ref):
        # x_ref: (pp, H, W)       input planes
        # o_ref: (pp, H_out, W_out) padded output planes
        o_ref[...] = jnp.zeros_like(o_ref)                      # zero margins
        o_ref[:, pad_top:pad_top + H, pad_left:pad_left + W] = x_ref[...]
    return kernel


# ------------------------------- forward ----------------------------------- #
def adaptive_padding_forward(x, kernel_size=1, stride=1, dilation=1,
                             padding="corner"):
    """Pallas implementation of AdaptivePadding.forward.

    x: (B, C, H, W) NCHW, like PyTorch. Returns padded x (or x unchanged if no
    padding is required).
    """
    assert padding in ("same", "corner")
    kernel_size = to_2tuple(kernel_size)
    stride = to_2tuple(stride)
    dilation = to_2tuple(dilation)

    B, C, H, W = x.shape
    pad_h, pad_w = get_pad_shape((H, W), kernel_size, stride, dilation)
    if pad_h == 0 and pad_w == 0:
        return x  # matches the PyTorch forward: no pad, return input as-is

    if padding == "corner":
        pad_top, pad_left = 0, 0
    else:  # 'same'
        pad_top, pad_left = pad_h // 2, pad_w // 2

    H_out, W_out = H + pad_h, W + pad_w
    n_planes = B * C
    x_flat = x.reshape(n_planes, H, W)  # leading-dim merge: layout-preserving

    itemsize = jnp.dtype(x.dtype).itemsize
    pp = _pick_planes_per_block(n_planes, H * W * itemsize,
                                H_out * W_out * itemsize)

    out = pl.pallas_call(
        _make_pad_kernel(H, W, pad_top, pad_left),
        out_shape=jax.ShapeDtypeStruct((n_planes, H_out, W_out), x.dtype),
        grid=(n_planes // pp,),
        in_specs=[pl.BlockSpec((pp, H, W), lambda i: (i, 0, 0))],
        out_specs=pl.BlockSpec((pp, H_out, W_out), lambda i: (i, 0, 0)),
        compiler_params=pltpu.CompilerParams(
            dimension_semantics=("parallel",)),
    )(x_flat)

    return out.reshape(B, C, H_out, W_out)


# --------------------------------- main ------------------------------------ #
if __name__ == "__main__":
    key = jax.random.PRNGKey(0)
    B, C, H, W = 2, 4, 16, 16
    x = jax.random.normal(key, (B, C, H, W), dtype=jnp.float32)

    # 'corner' mode: kernel=3, stride=2 -> pad_h = pad_w = 1 (bottom/right only)
    out_c = adaptive_padding_forward(x, kernel_size=3, stride=2, dilation=1,
                                     padding="corner")
    out_c = jax.block_until_ready(out_c)
    ref_c = jnp.pad(x, ((0, 0), (0, 0), (0, 1), (0, 1)))
    assert out_c.shape == (B, C, 17, 17)
    assert jnp.array_equal(out_c, ref_c)

    # 'same' mode: kernel=7, stride=4 -> pad = 3, split as 1 (top/left) + 2 (bot/right)
    out_s = adaptive_padding_forward(x, kernel_size=7, stride=4, dilation=1,
                                     padding="same")
    out_s = jax.block_until_ready(out_s)
    ref_s = jnp.pad(x, ((0, 0), (0, 0), (1, 2), (1, 2)))
    assert out_s.shape == (B, C, 19, 19)
    assert jnp.array_equal(out_s, ref_s)

    # No padding required: kernel == stride == 4 divides 16 -> input unchanged.
    out_n = adaptive_padding_forward(x, kernel_size=4, stride=4, padding="corner")
    assert out_n.shape == x.shape and jnp.array_equal(out_n, x)

    print("KERNEL_OK")
</pallas_src>

<mosaic_0001>
module attributes {stable_mosaic.version = 11 : i64} {
  func.func @kernel(%arg0: i32, %arg1: memref<4x16x16xf32, #tpu.memory_space<vmem>>, %arg2: memref<4x17x17xf32, #tpu.memory_space<vmem>>) attributes {dimension_semantics = [#tpu.dimension_semantics<parallel>], iteration_bounds = array<i64: 2>, scalar_prefetch = 0 : i64, scratch_operands = 0 : i64, tpu.core_type = #tpu.core_type<tc>, window_params = [{transform_indices = @transform_0, window_bounds = array<i64: 4, 16, 16>}, {transform_indices = @transform_1, window_bounds = array<i64: 4, 17, 17>}]} {
    %cst = arith.constant 0.000000e+00 : f32
    %0 = vector.broadcast %cst : f32 to vector<4x17x17xf32>
    %c0 = arith.constant 0 : index
    %c0_0 = arith.constant 0 : index
    %c0_1 = arith.constant 0 : index
    %1 = vector.load %arg2[%c0, %c0_0, %c0_1] : memref<4x17x17xf32, #tpu.memory_space<vmem>>, vector<4x17x17xf32>
    tpu.vector_store %arg2[%c0, %c0_0, %c0_1], %0 {strides = array<i32>} : memref<4x17x17xf32, #tpu.memory_space<vmem>>, vector<4x17x17xf32>,
    %c0_2 = arith.constant 0 : index
    %c0_3 = arith.constant 0 : index
    %c0_4 = arith.constant 0 : index
    %2 = vector.load %arg1[%c0_2, %c0_3, %c0_4] : memref<4x16x16xf32, #tpu.memory_space<vmem>>, vector<4x16x16xf32>
    %c0_5 = arith.constant 0 : index
    %c0_6 = arith.constant 0 : index
    %c0_7 = arith.constant 0 : index
    %3 = vector.load %arg2[%c0_5, %c0_6, %c0_7] : memref<4x17x17xf32, #tpu.memory_space<vmem>>, vector<4x16x16xf32>
    tpu.vector_store %arg2[%c0_5, %c0_6, %c0_7], %2 {strides = array<i32>} : memref<4x17x17xf32, #tpu.memory_space<vmem>>, vector<4x16x16xf32>,
    return
  }
  func.func @transform_0(%arg0: i32) -> (i32, i32, i32) {
    %c0_i32 = arith.constant 0 : i32
    %c0_i32_0 = arith.constant 0 : i32
    %c0_i32_1 = arith.constant 0 : i32
    return %arg0, %c0_i32, %c0_i32_0 : i32, i32, i32
  }
  func.func @transform_1(%arg0: i32) -> (i32, i32, i32) {
    %c0_i32 = arith.constant 0 : i32
    %c0_i32_0 = arith.constant 0 : i32
    %c0_i32_1 = arith.constant 0 : i32
    return %arg0, %c0_i32, %c0_i32_0 : i32, i32, i32
  }
}

</mosaic_0001>

<llo_original>
// kernel: tpu_custom_call.1
$region0: #{tpu_custom_call.1}
  #allocation0 [shape = 'u32[]', space=smem, size = 0x4, offset = 0x4, fixed_abs, tag = 'smem constant byte address 0x4 - core index']
  #allocation1 [shape = 'u32[144,128]{1,0:T(1,128)}', space=vmem, size = 0x12000, scoped, tag = 'internal scratch']
  %s0 = inlined_call_operand.hbm [shape: f32[8,16,16], index: 0, kind: input, shape index: {}]
  %s1 = inlined_call_operand.vmem [shape: f32[8,17,17], index: 1, kind: output, shape index: {}]
  %s2 = sld [smem:[#allocation0]]
  $region41: #{tpu_custom_call.1} parent=0
    _
  %s4 = ssub.s32 1, %s2
  %s5 = scalar_select 0, %s4, %s2
  $region1: #{tpu_custom_call.1} parent=0
    #allocation2 [shape = 'u8[65536]{0}', space=vmem, size = 0x10000, scoped, tag = 'input window, operand 0']
    #allocation3 [shape = 's32[2]{0}', space=sflag, size = 0x8, scoped, tag = 'scoped memory for tpu_custom_call.1']
    %6 = vsyncpa [#allocation3], 0
    %s7 = scalar_lea.sflag [#allocation3], 1
    %8 = vsyncpa %s7, 0
    loop: start=0, step=1, limit=4
    $region2: #{tpu_custom_call.1} parent=1 // loop_pre_header
      _
    $region3: #{tpu_custom_call.1} parent=1 // loop_header
      %s10 = sphi 0, %s14
      %p11 = scmp.ge.s32.totalorder %s10, 4
      %s20 = sphi 0, %s22
      %s23 = sphi 0, %s20
      %s24 = sphi 0, %s23
      %s40 = sphi 0, %s24
      %s46 = sphi 0, %s48
      %s49 = sphi 0, %s46
      %s50 = sphi 0, %s49
      %s66 = sphi 0, %s50
    $region4: #{tpu_custom_call.1} parent=1 // loop_header_branch
      %13 = sbr.rel (%p11) target = $region8
    $region5: #{tpu_custom_call.1} parent=1 // loop_body
      %s15 = ssub.s32 %s10, 1
      %s16 = ssub.s32 %s10, 2
      %s17 = sadd.s32 %s10, 1
      %s18 = ssub.s32 %s10, %s17
      %p19 = scmp.eq.s32.totalorder %s18, 0
      %s21 = sadd.s32 %s20, 1
      %s22 = scalar_select %p19, %s20, %s21
      %p25 = pneg %p19
      %p26 = scmp.eq.s32.totalorder %s10, 1
      %p27 = por %p25, %p26
      %p28 = scmp.ne.s32.totalorder %s20, %s23
      %p29 = scmp.eq.s32.totalorder %s10, 0
      %p30 = por %p28, %p29
      %p31 = scmp.ne.s32.totalorder %s20, %s23
      %p32 = scmp.eq.s32.totalorder %s15, 1
      %p33 = por %p31, %p32
      %p34 = scmp.ne.s32.totalorder %s23, %s24
      %p35 = scmp.eq.s32.totalorder %s15, 0
      %p36 = por %p34, %p35
      %p37 = scmp.ne.s32.totalorder %s23, %s24
      %p38 = scmp.eq.s32.totalorder %s16, 1
      %p39 = por %p37, %p38
      %p41 = scmp.ne.s32.totalorder %s24, %s40
      %p42 = scmp.eq.s32.totalorder %s16, 0
      %p43 = por %p41, %p42
      %s44 = ssub.s32 %s10, %s17
      %p45 = scmp.eq.s32.totalorder %s44, 0
      %s47 = sadd.s32 %s46, 1
      %s48 = scalar_select %p45, %s46, %s47
      %p51 = pneg %p45
      %p52 = scmp.eq.s32.totalorder %s10, 1
      %p53 = por %p51, %p52
      %p54 = scmp.ne.s32.totalorder %s46, %s49
      %p55 = scmp.eq.s32.totalorder %s10, 0
      %p56 = por %p54, %p55
      %p57 = scmp.ne.s32.totalorder %s46, %s49
      %p58 = scmp.eq.s32.totalorder %s15, 1
      %p59 = por %p57, %p58
      %p60 = scmp.ne.s32.totalorder %s49, %s50
      %p61 = scmp.eq.s32.totalorder %s15, 0
      %p62 = por %p60, %p61
      %p63 = scmp.ne.s32.totalorder %s49, %s50
      %p64 = scmp.eq.s32.totalorder %s16, 1
      %p65 = por %p63, %p64
      %p67 = scmp.ne.s32.totalorder %s50, %s66
      %p68 = scmp.eq.s32.totalorder %s16, 0
      %p69 = por %p67, %p68
      %p70 = scmp.le.s32.totalorder 1, %s10
      %p71 = scmp.lt.s32.totalorder %s10, 3
      %p72 = pnand %p70, %p71
      %p73 = pneg %p72
      // Predicated region
      $region9: #{tpu_custom_call.1} parent=5 // pred_check
        _
      $region10: #{tpu_custom_call.1} parent=5 // pred_check_branch
        %75 = sbr.rel (%p72) target = $region12
      $region11: #{tpu_custom_call.1} parent=5 // pred_region
        %s76 = ssub.s32 %s10, 1
      $region12: #{tpu_custom_call.1} parent=5 // pred_fallthru
        _
      %p77 = scmp.lt.s32.totalorder %s10, 2
      // Predicated region
      $region13: #{tpu_custom_call.1} parent=5 // pred_check
        %p78 = pneg %p77
      $region14: #{tpu_custom_call.1} parent=5 // pred_check_branch
        %80 = sbr.rel (%p78) target = $region16
      $region15: #{tpu_custom_call.1} parent=5 // pred_region
        // Predicated region
        $region17: #{tpu_custom_call.1} parent=15 // pred_check
          %p81 = pneg %p30
        $region18: #{tpu_custom_call.1} parent=15 // pred_check_branch
          %83 = sbr.rel (%p81) target = $region20
        $region19: #{tpu_custom_call.1} parent=15 // pred_region
          %s84 = sand.u32 %s20, 1
          %s85 = scalar_lea.sflag [#allocation3], %s84
          %s86 = sand.u32 %s20, 1
          %s87 = smul.addr %s86, 64
          %s88 = scalar_lea.vmem [#allocation2], %s87
          %s89 = smul.u32 4, %s10
          %s91 = ssub.s32 1024, 1024
          %92 = vsyncadd %s85, %s91
          %s93 = smul.addr %s89, 2
          %s94 = smul.addr %s93, 128
          %s95 = scalar_lea.hbm %s0, %s94
          %s96 = sshll.u32 %s88, 4
          %s97 = int_to_ptr.vmem [resolvable:$true] %s96
          %102 = dma.hbm_to_vmem [thread:$0]  %s95, 1024, %s97, %s85, 128, 128, 8
        $region20: #{tpu_custom_call.1} parent=15 // pred_fallthru
          _
      $region16: #{tpu_custom_call.1} parent=5 // pred_fallthru
        _
      %p103 = scmp.le.s32.totalorder 1, %s10
      %p104 = scmp.lt.s32.totalorder %s10, 3
      %p105 = pnand %p103, %p104
      %p106 = pneg %p105
      // Predicated region
      $region21: #{tpu_custom_call.1} parent=5 // pred_check
        _
      $region22: #{tpu_custom_call.1} parent=5 // pred_check_branch
        %108 = sbr.rel (%p105) target = $region24
      $region23: #{tpu_custom_call.1} parent=5 // pred_region
        %s109 = ssub.s32 %s10, 1
        %s110 = sand.u32 %s23, 1
        %s111 = scalar_lea.sflag [#allocation3], %s110
        %s112 = sand.u32 %s23, 1
        %s113 = smul.addr %s112, 64
        %s114 = scalar_lea.vmem [#allocation2], %s113
        // Predicated region
        $region25: #{tpu_custom_call.1} parent=23 // pred_check
          %p115 = pneg %p36
        $region26: #{tpu_custom_call.1} parent=23 // pred_check_branch
          %117 = sbr.rel (%p115) target = $region28
        $region27: #{tpu_custom_call.1} parent=23 // pred_region
          %118 = dma.done %s111, 1024
        $region28: #{tpu_custom_call.1} parent=23 // pred_fallthru
          _
        %s119 = sand.u32 %s23, 1
        %s120 = scalar_lea.sflag [#allocation3], %s119
        %s121 = sand.u32 %s23, 1
        %s122 = smul.addr %s121, 64
        %s123 = scalar_lea.vmem [#allocation2], %s122
        %p124 = pneg %p36
        %p125 = pneg %p33
        %p126 = pneg %p62
        %p127 = pneg %p59
        %s128 = smul.u32 4, %s15
        %p129 = scmp.lt.s32.totalorder %s128, 7
        %s130 = scalar_select %p129, %s128, 7
        %s131 = smul.addr %s130, 3
        %s132 = smul.addr %s131, 8
        %s133 = scalar_lea.vmem %s1, %s132
        %s134 = smul.u32 4, %s15
        %s135 = smul.u32 4, %s15
        %p136 = scmp.lt.s32.totalorder %s135, 7
        %s137 = scalar_select %p136, %s135, 7
        %s138 = smul.addr %s137, 3
        %s139 = smul.addr %s138, 8
        %s140 = scalar_lea.vmem %s1, %s139
        %s141 = smul.u32 4, %s15
        %vm142 = vcmask 138240
        %143 = vst.msk [vmem:[%s140] sm:$0xff] %vm142, 0.0
        %144 = vst.msk [vmem:[%s140 + $0x8] sm:$0xff] %vm142, 0.0
        %vm145 = vcmask 131072
        %146 = vst.msk [vmem:[%s140 + $0x10] sm:$0x1] %vm145, 0.0
        %147 = vst.msk [vmem:[%s140 + $0x18] sm:$0xff] %vm142, 0.0
        %148 = vst.msk [vmem:[%s140 + $0x20] sm:$0xff] %vm142, 0.0
        %149 = vst.msk [vmem:[%s140 + $0x28] sm:$0x1] %vm145, 0.0
        %150 = vst.msk [vmem:[%s140 + $0x30] sm:$0xff] %vm142, 0.0
        %151 = vst.msk [vmem:[%s140 + $0x38] sm:$0xff] %vm142, 0.0
        %152 = vst.msk [vmem:[%s140 + $0x40] sm:$0x1] %vm145, 0.0
        %153 = vst.msk [vmem:[%s140 + $0x48] sm:$0xff] %vm142, 0.0
        %154 = vst.msk [vmem:[%s140 + $0x50] sm:$0xff] %vm142, 0.0
        %155 = vst.msk [vmem:[%s140 + $0x58] sm:$0x1] %vm145, 0.0
        %v156 = vld [vmem:[%s114] sm:$0xff]
        %v157 = vld [vmem:[%s114 + $0x8] sm:$0xff]
        %v158 = vld [vmem:[%s114 + $0x10] sm:$0xff]
        %v159 = vld [vmem:[%s114 + $0x18] sm:$0xff]
        %v160 = vld [vmem:[%s114 + $0x20] sm:$0xff]
        %v161 = vld [vmem:[%s114 + $0x28] sm:$0xff]
        %v162 = vld [vmem:[%s114 + $0x30] sm:$0xff]
        %v163 = vld [vmem:[%s114 + $0x38] sm:$0xff]
        %vm164 = vcmask 130048
        %165 = vst.msk [vmem:[%s140] sm:$0xff] %vm164, %v156
        %166 = vst.msk [vmem:[%s140 + $0x8] sm:$0xff] %vm164, %v157
        %167 = vst.msk [vmem:[%s140 + $0x18] sm:$0xff] %vm164, %v158
        %168 = vst.msk [vmem:[%s140 + $0x20] sm:$0xff] %vm164, %v159
        %169 = vst.msk [vmem:[%s140 + $0x30] sm:$0xff] %vm164, %v160
        %170 = vst.msk [vmem:[%s140 + $0x38] sm:$0xff] %vm164, %v161
        %171 = vst.msk [vmem:[%s140 + $0x48] sm:$0xff] %vm164, %v162
        %172 = vst.msk [vmem:[%s140 + $0x50] sm:$0xff] %vm164, %v163
        %s173 = smul.u32 4, %s15
        %p174 = scmp.lt.s32.totalorder %s173, 7
        %s175 = scalar_select %p174, %s173, 7
        %s176 = smul.addr %s175, 3
        %s177 = smul.addr %s176, 8
        %s178 = scalar_lea.vmem %s1, %s177
        // Predicated region
        $region29: #{tpu_custom_call.1} parent=23 // pred_check
          %p179 = pneg %p59
        $region30: #{tpu_custom_call.1} parent=23 // pred_check_branch
          %181 = sbr.rel (%p179) target = $region32
        $region31: #{tpu_custom_call.1} parent=23 // pred_region
          %s182 = smul.u32 4, %s15
        $region32: #{tpu_custom_call.1} parent=23 // pred_fallthru
          _
      $region24: #{tpu_custom_call.1} parent=5 // pred_fallthru
        _
      %p183 = scmp.le.s32.totalorder 2, %s10
      // Predicated region
      $region33: #{tpu_custom_call.1} parent=5 // pred_check
        %p184 = pneg %p183
      $region34: #{tpu_custom_call.1} parent=5 // pred_check_branch
        %186 = sbr.rel (%p184) target = $region36
      $region35: #{tpu_custom_call.1} parent=5 // pred_region
        %s187 = ssub.s32 %s10, 2
        // Predicated region
        $region37: #{tpu_custom_call.1} parent=35 // pred_check
          %p188 = pneg %p65
        $region38: #{tpu_custom_call.1} parent=35 // pred_check_branch
          %190 = sbr.rel (%p188) target = $region40
        $region39: #{tpu_custom_call.1} parent=35 // pred_region
          %s191 = smul.u32 4, %s16
          %p192 = scmp.lt.s32.totalorder %s191, 7
          %s193 = scalar_select %p192, %s191, 7
          %s194 = smul.addr %s193, 3
          %s195 = smul.addr %s194, 8
          %s196 = scalar_lea.vmem %s1, %s195
        $region40: #{tpu_custom_call.1} parent=35 // pred_fallthru
          _
      $region36: #{tpu_custom_call.1} parent=5 // pred_fallthru
        _
    $region6: #{tpu_custom_call.1} parent=1 // loop_footer
      %s14 = sadd.s32 1, %s10
    $region7: #{tpu_custom_call.1} parent=1 // loop_footer_branch
      %9 = sbr.rel target = $region3
    $region8: #{tpu_custom_call.1} parent=1 // loop_exit
      _
    %197 = vsyncpa [#allocation3], 1
    %s198 = scalar_lea.sflag [#allocation3], 1
    %199 = vsyncpa %s198, 1

</llo_original>
